<compile_context>
chip_gen: v5e
topology: v5e:2x2
jax: 0.10.0
libtpu: 0.0.40
codegen_flags: <defaults>
</compile_context>

<pallas_src>
import jax
import jax.numpy as jnp
import numpy as np
from jax.experimental import pallas as pl
from jax.experimental.pallas import tpu as pltpu


# ----------------------------------------------------------------------------
# activation helper (mirrors activation_helper in the PyTorch module)
# ----------------------------------------------------------------------------
def activation_fn(name):
    if name == 'sigmoid':
        # exact identity; a single EUP tanh instead of exp + divide
        return lambda x: 0.5 * (jnp.tanh(0.5 * x) + 1.0)
    if name == 'tanh':
        return jnp.tanh
    if name == 'relu':
        return lambda x: jnp.maximum(x, 0.0)
    if name == 'leakyrelu':
        return lambda x: jnp.where(x >= 0, x, 0.01 * x)  # torch default slope
    if name is None:
        return lambda x: x
    raise ValueError('unsupported activation: %s' % name)


def _round_up(x, m):
    return ((x + m - 1) // m) * m


def _largest_divisor_leq(n, cap):
    for d in range(max(min(n, cap), 1), 0, -1):
        if n % d == 0:
            return d
    return 1


def _halo_block(lag, nt):
    """Smallest sublane-aligned halo (>= lag-1 rows) that divides the time tile."""
    need = max(lag - 1, 1)
    cands = [8, 16, 32, 64] + [128 * i for i in range(1, nt // 128 + 1)]
    for hb in cands:
        if hb >= need and nt % hb == 0:
            return hb
    return nt


# ----------------------------------------------------------------------------
# Pallas kernel factory.
# Ref order: x_main, x_halo, W0_merged, W_mid..., w_last, bias_packed, out.
# Internal layout: features on sublanes, time (x packed batches) on lanes.
# ----------------------------------------------------------------------------
def _make_mlp_kernel(lag, n_mid, act, cdt, nt, dims_out, b_offs):
    def kernel(xm_ref, xh_ref, w0_ref, *rest):
        w_mid_refs = rest[:n_mid]
        wl_ref = rest[n_mid]
        b_ref = rest[n_mid + 1]
        o_ref = rest[n_mid + 2]
        bt = xm_ref.shape[0]

        # Build the merged-tap MXU operand.  Per packed batch row:
        #   (time, C) -> (C, time) transpose (XLU slot), then the `lag`
        #   lane-shifted windows are stacked along sublanes -> (C*lag, nt).
        # The per-batch operands are laid side-by-side along lanes so every
        # later matmul / activation runs ONCE on (d, bt*nt).
        stacked = []
        for bi in range(bt):
            xt = jnp.concatenate([xm_ref[bi], xh_ref[bi]], axis=0)   # (nt+hb, C) f32
            xw = jnp.transpose(xt, (1, 0)).astype(cdt)               # (C, nt+hb)
            if lag > 1:
                xs = jnp.concatenate([xw[:, k:k + nt] for k in range(lag)], axis=0)
            else:
                xs = xw[:, :nt]
            stacked.append(xs)                                       # (C*lag, nt)
        xs_all = stacked[0] if bt == 1 else jnp.concatenate(stacked, axis=1)

        # ---- layer 0: single MXU matmul over the merged (C*lag) contraction.
        h = jnp.dot(w0_ref[...], xs_all, preferred_element_type=jnp.float32)
        h = h + b_ref[b_offs[0]:b_offs[0] + dims_out[0], :]

        # ---- middle 1x1 conv layers (activation applied before each layer)
        for li in range(n_mid):
            off = b_offs[1 + li]
            d_out = dims_out[1 + li]
            h = act(h)
            h = jnp.dot(w_mid_refs[li][...], h.astype(cdt),
                        preferred_element_type=jnp.float32)
            h = h + b_ref[off:off + d_out, :]

        # ---- last layer (d_out == 1): VPU multiply + sublane reduce.
        h = act(h)
        y = jnp.sum(h * wl_ref[...], axis=0, keepdims=True)          # (1, bt*nt)
        y = y + b_ref[b_offs[-1]:b_offs[-1] + 1, :]

        # lane-dense stores, one sublane row per packed batch element
        for bi in range(bt):
            o_ref[bi] = y[:, bi * nt:(bi + 1) * nt].astype(o_ref.dtype)

    return kernel


# ----------------------------------------------------------------------------
# Parameter construction (deterministic, PyTorch Conv1d-shaped weights)
# ----------------------------------------------------------------------------
def init_mlp_params(key, num_series, lag, hidden):
    """Returns list of (weight, bias) in PyTorch Conv1d layout: W (out, in, k)."""
    dims_in = [num_series] + list(hidden)
    dims_out = list(hidden) + [1]
    kernels = [lag] + [1] * len(hidden)
    params = []
    for d_in, d_out, k in zip(dims_in, dims_out, kernels):
        key, kw, kb = jax.random.split(key, 3)
        bound = 1.0 / np.sqrt(d_in * k)
        w = jax.random.uniform(kw, (d_out, d_in, k), jnp.float32, -bound, bound)
        b = jax.random.uniform(kb, (d_out,), jnp.float32, -bound, bound)
        params.append((w, b))
    return params


# ----------------------------------------------------------------------------
# Wrapper: natural-layout input, time tiling + halo, batch packing.
# ----------------------------------------------------------------------------
def mlp_forward_pallas(x, params, lag, activation='relu', use_bf16=True,
                       time_tile=512):
    """x: (B, T, num_series) float32 -> (B, T-lag+1, 1) float32.

    time_tile: output lanes per grid step (512 is a safe default on v7x with
    its 64 MiB VMEM; v5e/v6e can use 1024-2048 together with a larger
    vmem_limit_bytes).
    """
    B, T, C = x.shape
    x = x.astype(jnp.float32)
    n_layers = len(params)
    n_mid = n_layers - 2
    assert n_mid >= 0
    T_out = T - lag + 1
    assert T_out >= 1, "T must be >= lag"
    act = activation_fn(activation)
    cdt = jnp.bfloat16 if use_bf16 else jnp.float32

    # ---- time tiling (output lanes per grid step) --------------------------
    nt = min(int(time_tile), _round_up(T_out, 128))
    nt = max(nt, _round_up(max(lag - 1, 1), 128))
    nt = _round_up(nt, 128)
    n_t = pl.cdiv(T_out, nt)
    n_total = n_t * nt
    hb = _halo_block(lag, nt)               # halo rows (>= lag-1, divides nt)
    m = nt // hb
    n_hb = pl.cdiv(T, hb)

    # ---- small-T batch packing ---------------------------------------------
    bt_cap = max(1, 1024 // nt)
    bt = _largest_divisor_leq(B, bt_cap)
    while bt > 1 and (B // bt) * n_t < 2:   # keep >= 2 grid steps for megacore
        bt = _largest_divisor_leq(B, bt - 1)
    n_b = B // bt

    # ---- parameter packing (tiny one-off work; cache it outside the hot
    #      loop in production) ------------------------------------------------
    w0, _ = params[0]
    h0 = w0.shape[0]
    # W0m[h, k*C + c] == w0[h, c, k]  -> matches the in-kernel stacking order
    w0m = jnp.transpose(w0, (0, 2, 1)).reshape(h0, lag * C).astype(cdt)
    w_mid = [w[:, :, 0].astype(cdt) for (w, _) in params[1:-1]]          # (d_out, d_in)
    w_last = jnp.transpose(params[-1][0][:, :, 0], (1, 0)).astype(jnp.float32)  # (d_last, 1)

    dims_out = [p[0].shape[0] for p in params]
    b_offs, segs, off = [], [], 0
    for (_, b) in params:                   # all biases packed into one buffer
        d = b.shape[0]
        b_offs.append(off)
        dp = _round_up(d, 8)                # keep slice offsets sublane-aligned
        segs.append(jnp.pad(b.reshape(d, 1).astype(jnp.float32),
                            ((0, dp - d), (0, 0))))
        off += dp
    bias_packed = jnp.concatenate(segs, axis=0)   # (S, 1) f32

    kernel = _make_mlp_kernel(lag, n_mid, act, cdt, nt, dims_out, b_offs)

    def _const(shape):
        nd = len(shape)
        return pl.BlockSpec(shape, lambda *_: (0,) * nd)

    in_specs = [
        # streamed input tile in its NATURAL (B, T, C) layout (no XLA transpose)
        pl.BlockSpec((bt, nt, C), lambda b, t: (b, t, 0)),
        # small halo tile: first hb rows of the next time tile (clamped; only
        # consumed when a layer-0 window crosses the tile boundary)
        pl.BlockSpec((bt, hb, C),
                     lambda b, t: (b, jnp.minimum((t + 1) * m, n_hb - 1), 0)),
        _const(w0m.shape),
        *[_const(w.shape) for w in w_mid],
        _const(w_last.shape),
        _const(bias_packed.shape),
    ]

    out = pl.pallas_call(
        kernel,
        out_shape=jax.ShapeDtypeStruct((B, 1, n_total), jnp.float32),
        grid=(n_b, n_t),
        in_specs=in_specs,
        out_specs=pl.BlockSpec((bt, 1, nt), lambda b, t: (b, 0, t)),
        compiler_params=pltpu.CompilerParams(
            dimension_semantics=("parallel", "parallel"),
            vmem_limit_bytes=32 * 1024 * 1024),
    )(x, x, w0m, *w_mid, w_last, bias_packed)

    return out[:, 0, :T_out][..., None]     # (B, T_out, 1)


# ----------------------------------------------------------------------------
# Pure-JAX reference (exact PyTorch forward semantics via lax conv)
# ----------------------------------------------------------------------------
def mlp_forward_reference(x, params, activation='relu'):
    act = activation_fn(activation)
    X = jnp.transpose(x, (0, 2, 1))          # (B, C, T) == X.transpose(2, 1)
    for i, (w, b) in enumerate(params):
        if i != 0:
            X = act(X)
        X = jax.lax.conv_general_dilated(
            X, w, window_strides=(1,), padding='VALID',
            dimension_numbers=('NCH', 'OIH', 'NCH')) + b[None, :, None]
    return jnp.transpose(X, (0, 2, 1))       # (B, T_out, 1)


if __name__ == "__main__":
    key = jax.random.PRNGKey(0)

    # --- Test 1: module-scale shapes; exercises batch packing (bt > 1) ------
    B, T, C, lag, hidden, actn = 4, 16, 4, 3, [32, 32], 'relu'
    key, kx, kp = jax.random.split(key, 3)
    x = jax.random.normal(kx, (B, T, C), jnp.float32)
    params = init_mlp_params(kp, C, lag, hidden)

    ref = jax.block_until_ready(mlp_forward_reference(x, params, actn))

    out_bf16 = jax.block_until_ready(
        mlp_forward_pallas(x, params, lag, actn, use_bf16=True))
    assert out_bf16.shape == (B, T - lag + 1, 1), out_bf16.shape
    np.testing.assert_allclose(np.asarray(out_bf16), np.asarray(ref),
                               atol=3e-2, rtol=3e-2)

    out_f32 = jax.block_until_ready(
        mlp_forward_pallas(x, params, lag, actn, use_bf16=False))
    np.testing.assert_allclose(np.asarray(out_f32), np.asarray(ref),
                               atol=1e-4, rtol=1e-4)

    # --- Test 2: single long sequence; exercises time tiling + halo ---------
    B2, T2, C2, lag2, hidden2 = 1, 700, 4, 5, [16]
    key, kx2, kp2 = jax.random.split(key, 3)
    x2 = jax.random.normal(kx2, (B2, T2, C2), jnp.float32)
    params2 = init_mlp_params(kp2, C2, lag2, hidden2)

    ref2 = jax.block_until_ready(mlp_forward_reference(x2, params2, 'sigmoid'))
    out2 = jax.block_until_ready(
        mlp_forward_pallas(x2, params2, lag2, 'sigmoid', use_bf16=False))
    assert out2.shape == (B2, T2 - lag2 + 1, 1), out2.shape
    np.testing.assert_allclose(np.asarray(out2), np.asarray(ref2),
                               atol=1e-3, rtol=1e-3)

    print("KERNEL_OK")
</pallas_src>

<mosaic_0001>
module attributes {stable_mosaic.version = 11 : i64} {
  func.func @kernel(%arg0: i32, %arg1: i32, %arg2: memref<2x128x4xf32, #tpu.memory_space<vmem>>, %arg3: memref<2x8x4xf32, #tpu.memory_space<vmem>>, %arg4: memref<32x12xbf16, #tpu.memory_space<vmem>>, %arg5: memref<32x32xbf16, #tpu.memory_space<vmem>>, %arg6: memref<32x1xf32, #tpu.memory_space<vmem>>, %arg7: memref<72x1xf32, #tpu.memory_space<vmem>>, %arg8: memref<2x1x128xf32, #tpu.memory_space<vmem>>) attributes {dimension_semantics = [#tpu.dimension_semantics<parallel>, #tpu.dimension_semantics<parallel>], iteration_bounds = array<i64: 2, 1>, scalar_prefetch = 0 : i64, scratch_operands = 0 : i64, tpu.core_type = #tpu.core_type<tc>, window_params = [{transform_indices = @transform_0, window_bounds = array<i64: 2, 128, 4>}, {transform_indices = @transform_1, window_bounds = array<i64: 2, 8, 4>}, {pipeline_mode = #tpu.pipeline_mode<synchronous>, transform_indices = @transform_2, window_bounds = array<i64: 32, 12>}, {pipeline_mode = #tpu.pipeline_mode<synchronous>, transform_indices = @transform_3, window_bounds = array<i64: 32, 32>}, {pipeline_mode = #tpu.pipeline_mode<synchronous>, transform_indices = @transform_4, window_bounds = array<i64: 32, 1>}, {pipeline_mode = #tpu.pipeline_mode<synchronous>, transform_indices = @transform_5, window_bounds = array<i64: 72, 1>}, {transform_indices = @transform_6, window_bounds = array<i64: 2, 1, 128>}]} {
    %c0 = arith.constant 0 : index
    %c0_0 = arith.constant 0 : index
    %c0_1 = arith.constant 0 : index
    %0 = vector.load %arg2[%c0, %c0_0, %c0_1] : memref<2x128x4xf32, #tpu.memory_space<vmem>>, vector<1x128x4xf32>
    %1 = vector.shape_cast %0 : vector<1x128x4xf32> to vector<128x4xf32>
    %c0_2 = arith.constant 0 : index
    %c0_3 = arith.constant 0 : index
    %c0_4 = arith.constant 0 : index
    %2 = vector.load %arg3[%c0_2, %c0_3, %c0_4] : memref<2x8x4xf32, #tpu.memory_space<vmem>>, vector<1x8x4xf32>
    %3 = vector.shape_cast %2 : vector<1x8x4xf32> to vector<8x4xf32>
    %4 = tpu.concatenate %1, %3 in 0 : vector<128x4xf32>, vector<8x4xf32> -> vector<136x4xf32>
    %5 = tpu.transpose %4, [1, 0] : vector<136x4xf32> -> vector<4x136xf32>
    %6 = arith.truncf %5 : vector<4x136xf32> to vector<4x136xbf16>
    %7 = vector.extract_strided_slice %6 {offsets = [0, 0], sizes = [4, 128], strides = [1, 1]} : vector<4x136xbf16> to vector<4x128xbf16>
    %8 = vector.extract_strided_slice %6 {offsets = [0, 1], sizes = [4, 128], strides = [1, 1]} : vector<4x136xbf16> to vector<4x128xbf16>
    %9 = vector.extract_strided_slice %6 {offsets = [0, 2], sizes = [4, 128], strides = [1, 1]} : vector<4x136xbf16> to vector<4x128xbf16>
    %10 = tpu.concatenate %7, %8, %9 in 0 : vector<4x128xbf16>, vector<4x128xbf16>, vector<4x128xbf16> -> vector<12x128xbf16>
    %c1 = arith.constant 1 : index
    %c0_5 = arith.constant 0 : index
    %c0_6 = arith.constant 0 : index
    %11 = vector.load %arg2[%c1, %c0_5, %c0_6] : memref<2x128x4xf32, #tpu.memory_space<vmem>>, vector<1x128x4xf32>
    %12 = vector.shape_cast %11 : vector<1x128x4xf32> to vector<128x4xf32>
    %c1_7 = arith.constant 1 : index
    %c0_8 = arith.constant 0 : index
    %c0_9 = arith.constant 0 : index
    %13 = vector.load %arg3[%c1_7, %c0_8, %c0_9] : memref<2x8x4xf32, #tpu.memory_space<vmem>>, vector<1x8x4xf32>
    %14 = vector.shape_cast %13 : vector<1x8x4xf32> to vector<8x4xf32>
    %15 = tpu.concatenate %12, %14 in 0 : vector<128x4xf32>, vector<8x4xf32> -> vector<136x4xf32>
    %16 = tpu.transpose %15, [1, 0] : vector<136x4xf32> -> vector<4x136xf32>
    %17 = arith.truncf %16 : vector<4x136xf32> to vector<4x136xbf16>
    %18 = vector.extract_strided_slice %17 {offsets = [0, 0], sizes = [4, 128], strides = [1, 1]} : vector<4x136xbf16> to vector<4x128xbf16>
    %19 = vector.extract_strided_slice %17 {offsets = [0, 1], sizes = [4, 128], strides = [1, 1]} : vector<4x136xbf16> to vector<4x128xbf16>
    %20 = vector.extract_strided_slice %17 {offsets = [0, 2], sizes = [4, 128], strides = [1, 1]} : vector<4x136xbf16> to vector<4x128xbf16>
    %21 = tpu.concatenate %18, %19, %20 in 0 : vector<4x128xbf16>, vector<4x128xbf16>, vector<4x128xbf16> -> vector<12x128xbf16>
    %22 = tpu.concatenate %10, %21 in 1 : vector<12x128xbf16>, vector<12x128xbf16> -> vector<12x256xbf16>
    %c0_10 = arith.constant 0 : index
    %c0_11 = arith.constant 0 : index
    %23 = vector.load %arg4[%c0_10, %c0_11] : memref<32x12xbf16, #tpu.memory_space<vmem>>, vector<32x12xbf16>
    %cst = arith.constant dense<0.000000e+00> : vector<32x256xf32>
    %24 = tpu.matmul %23, %22, %cst {dimension_numbers = #tpu.dot_dimension_numbers<[1], [0], [0], [1], [0, 0, 1, 1], [], []>} : vector<32x12xbf16>, vector<12x256xbf16>, vector<32x256xf32> -> vector<32x256xf32>
    %c0_12 = arith.constant 0 : index
    %c0_13 = arith.constant 0 : index
    %25 = vector.load %arg7[%c0_12, %c0_13] : memref<72x1xf32, #tpu.memory_space<vmem>>, vector<32x1xf32>
    %26 = vector.broadcast %25 : vector<32x1xf32> to vector<32x256xf32>
    %27 = arith.addf %24, %26 : vector<32x256xf32>
    %cst_14 = arith.constant 0.000000e+00 : f32
    %28 = vector.broadcast %cst_14 : f32 to vector<32x256xf32>
    %29 = arith.maximumf %27, %28 : vector<32x256xf32>
    %c0_15 = arith.constant 0 : index
    %c0_16 = arith.constant 0 : index
    %30 = vector.load %arg5[%c0_15, %c0_16] : memref<32x32xbf16, #tpu.memory_space<vmem>>, vector<32x32xbf16>
    %31 = arith.truncf %29 : vector<32x256xf32> to vector<32x256xbf16>
    %cst_17 = arith.constant dense<0.000000e+00> : vector<32x256xf32>
    %32 = tpu.matmul %30, %31, %cst_17 {dimension_numbers = #tpu.dot_dimension_numbers<[1], [0], [0], [1], [0, 0, 1, 1], [], []>} : vector<32x32xbf16>, vector<32x256xbf16>, vector<32x256xf32> -> vector<32x256xf32>
    %c32 = arith.constant 32 : index
    %c0_18 = arith.constant 0 : index
    %33 = vector.load %arg7[%c32, %c0_18] : memref<72x1xf32, #tpu.memory_space<vmem>>, vector<32x1xf32>
    %34 = vector.broadcast %33 : vector<32x1xf32> to vector<32x256xf32>
    %35 = arith.addf %32, %34 : vector<32x256xf32>
    %cst_19 = arith.constant 0.000000e+00 : f32
    %36 = vector.broadcast %cst_19 : f32 to vector<32x256xf32>
    %37 = arith.maximumf %35, %36 : vector<32x256xf32>
    %c0_20 = arith.constant 0 : index
    %c0_21 = arith.constant 0 : index
    %38 = vector.load %arg6[%c0_20, %c0_21] : memref<32x1xf32, #tpu.memory_space<vmem>>, vector<32x1xf32>
    %39 = vector.broadcast %38 : vector<32x1xf32> to vector<32x256xf32>
    %40 = arith.mulf %37, %39 : vector<32x256xf32>
    %cst_22 = arith.constant dense<0.000000e+00> : vector<256xf32>
    %41 = vector.multi_reduction <add>, %40, %cst_22 [0] : vector<32x256xf32> to vector<256xf32>
    %42 = vector.shape_cast %41 : vector<256xf32> to vector<1x256xf32>
    %c64 = arith.constant 64 : index
    %c0_23 = arith.constant 0 : index
    %43 = vector.load %arg7[%c64, %c0_23] : memref<72x1xf32, #tpu.memory_space<vmem>>, vector<1x1xf32>
    %44 = vector.broadcast %43 : vector<1x1xf32> to vector<1x256xf32>
    %45 = arith.addf %42, %44 : vector<1x256xf32>
    %46 = vector.extract_strided_slice %45 {offsets = [0, 0], sizes = [1, 128], strides = [1, 1]} : vector<1x256xf32> to vector<1x128xf32>
    %c0_24 = arith.constant 0 : index
    %c0_25 = arith.constant 0 : index
    %c0_26 = arith.constant 0 : index
    %47 = vector.load %arg8[%c0_24, %c0_25, %c0_26] : memref<2x1x128xf32, #tpu.memory_space<vmem>>, vector<1x1x128xf32>
    %48 = vector.shape_cast %47 : vector<1x1x128xf32> to vector<1x128xf32>
    %49 = vector.shape_cast %46 : vector<1x128xf32> to vector<1x1x128xf32>
    tpu.vector_store %arg8[%c0_24, %c0_25, %c0_26], %49 {strides = array<i32>} : memref<2x1x128xf32, #tpu.memory_space<vmem>>, vector<1x1x128xf32>,
    %50 = vector.extract_strided_slice %45 {offsets = [0, 128], sizes = [1, 128], strides = [1, 1]} : vector<1x256xf32> to vector<1x128xf32>
    %c1_27 = arith.constant 1 : index
    %c0_28 = arith.constant 0 : index
    %c0_29 = arith.constant 0 : index
    %51 = vector.load %arg8[%c1_27, %c0_28, %c0_29] : memref<2x1x128xf32, #tpu.memory_space<vmem>>, vector<1x1x128xf32>
    %52 = vector.shape_cast %51 : vector<1x1x128xf32> to vector<1x128xf32>
    %53 = vector.shape_cast %50 : vector<1x128xf32> to vector<1x1x128xf32>
    tpu.vector_store %arg8[%c1_27, %c0_28, %c0_29], %53 {strides = array<i32>} : memref<2x1x128xf32, #tpu.memory_space<vmem>>, vector<1x1x128xf32>,
    return
  }
  func.func @transform_0(%arg0: i32, %arg1: i32) -> (i32, i32, i32) {
    %c0_i32 = arith.constant 0 : i32
    %c0_i32_0 = arith.constant 0 : i32
    return %arg0, %arg1, %c0_i32 : i32, i32, i32
  }
  func.func @transform_1(%arg0: i32, %arg1: i32) -> (i32, i32, i32) {
    %c1_i32 = arith.constant 1 : i32
    %0 = arith.addi %arg1, %c1_i32 : i32
    %c16_i32 = arith.constant 16 : i32
    %1 = arith.muli %0, %c16_i32 : i32
    %c1_i32_0 = arith.constant 1 : i32
    %2 = arith.minsi %1, %c1_i32_0 : i32
    %c0_i32 = arith.constant 0 : i32
    %c0_i32_1 = arith.constant 0 : i32
    return %arg0, %2, %c0_i32 : i32, i32, i32
  }
  func.func @transform_2(%arg0: i32, %arg1: i32) -> (i32, i32) {
    %c0_i32 = arith.constant 0 : i32
    %c0_i32_0 = arith.constant 0 : i32
    %c0_i32_1 = arith.constant 0 : i32
    return %c0_i32, %c0_i32_0 : i32, i32
  }
  func.func @transform_3(%arg0: i32, %arg1: i32) -> (i32, i32) {
    %c0_i32 = arith.constant 0 : i32
    %c0_i32_0 = arith.constant 0 : i32
    %c0_i32_1 = arith.constant 0 : i32
    return %c0_i32, %c0_i32_0 : i32, i32
  }
  func.func @transform_4(%arg0: i32, %arg1: i32) -> (i32, i32) {
    %c0_i32 = arith.constant 0 : i32
    %c0_i32_0 = arith.constant 0 : i32
    %c0_i32_1 = arith.constant 0 : i32
    return %c0_i32, %c0_i32_0 : i32, i32
  }
  func.func @transform_5(%arg0: i32, %arg1: i32) -> (i32, i32) {
    %c0_i32 = arith.constant 0 : i32
    %c0_i32_0 = arith.constant 0 : i32
    %c0_i32_1 = arith.constant 0 : i32
    return %c0_i32, %c0_i32_0 : i32, i32
  }
  func.func @transform_6(%arg0: i32, %arg1: i32) -> (i32, i32, i32) {
    %c0_i32 = arith.constant 0 : i32
    %c0_i32_0 = arith.constant 0 : i32
    return %arg0, %c0_i32, %arg1 : i32, i32, i32
  }
}

</mosaic_0001>

<llo_original>
// kernel: tpu_custom_call.1
$region0: #{tpu_custom_call.1}
  #allocation0 [shape = 'u32[]', space=smem, size = 0x4, offset = 0x4, fixed_abs, tag = 'smem constant byte address 0x4 - core index']
  #allocation1 [shape = 'u32[72,128]{1,0:T(1,128)}', space=vmem, size = 0x9000, scoped, tag = 'internal scratch']
  %s0 = inlined_call_operand.vmem [shape: f32[4,16,4], index: 0, kind: input, shape index: {}]
  %s1 = inlined_call_operand.vmem [shape: f32[4,16,4], index: 1, kind: input, shape index: {}]
  %s2 = inlined_call_operand.vmem [shape: bf16[32,12], index: 2, kind: input, shape index: {}]
  %s3 = inlined_call_operand.vmem [shape: bf16[32,32], index: 3, kind: input, shape index: {}]
  %s4 = inlined_call_operand.vmem [shape: f32[32,1], index: 4, kind: input, shape index: {}]
  %s5 = inlined_call_operand.vmem [shape: f32[72,1], index: 5, kind: input, shape index: {}]
  %s6 = inlined_call_operand.hbm [shape: f32[4,1,128], index: 6, kind: output, shape index: {}]
  %s7 = sld [smem:[#allocation0]]
  $region147: #{tpu_custom_call.1} parent=0
    _
  %s9 = ssub.s32 1, %s7
  %s10 = scalar_select 0, %s9, %s7
  $region1: #{tpu_custom_call.1} parent=0
    #allocation2 [shape = 'u8[262144]{0}', space=vmem, size = 0x40000, scoped, tag = 'input window, operand 0']
    #allocation3 [shape = 'u8[16384]{0}', space=vmem, size = 0x4000, scoped, tag = 'input window, operand 1']
    #allocation4 [shape = 'u8[2048]{0}', space=vmem, size = 0x800, scoped, tag = 'output window, operand 0']
    #allocation5 [shape = 's32[2]{0}', space=sflag, size = 0x8, scoped, tag = 'scoped memory for tpu_custom_call.1']
    %11 = vsyncpa [#allocation5], 0
    %s12 = scalar_lea.sflag [#allocation5], 1
    %13 = vsyncpa %s12, 0
    loop: start=0, step=1, limit=4
    $region2: #{tpu_custom_call.1} parent=1 // loop_pre_header
      _
    $region3: #{tpu_custom_call.1} parent=1 // loop_header
      %s15 = sphi 0, %s19
      %p16 = scmp.ge.s32.totalorder %s15, 4
      %s22 = sphi 0, %s34
      %s23 = sphi 0, %s30
      %s24 = sphi 0, %s22
      %s25 = sphi 0, %s23
      %s26 = sphi 0, %s24
      %s27 = sphi 0, %s25
      %s39 = sphi 0, %s41
      %s42 = sphi 0, %s39
      %s43 = sphi 0, %s42
      %s59 = sphi 0, %s43
      %s75 = sphi 0, %s77
      %s78 = sphi 0, %s75
      %s79 = sphi 0, %s78
      %s95 = sphi 0, %s79
      %s99 = sphi 0, %s99
      %s101 = sphi 0, %s99
      %s102 = sphi 0, %s101
      %s116 = sphi 0, %s102
      %s120 = sphi 0, %s120
      %s122 = sphi 0, %s120
      %s123 = sphi 0, %s122
      %s137 = sphi 0, %s123
      %s141 = sphi 0, %s141
      %s143 = sphi 0, %s141
      %s144 = sphi 0, %s143
      %s158 = sphi 0, %s144
      %s162 = sphi 0, %s162
      %s164 = sphi 0, %s162
      %s165 = sphi 0, %s164
      %s179 = sphi 0, %s165
      %s187 = sphi 0, %s189
      %s190 = sphi 0, %s187
      %s191 = sphi 0, %s190
      %s207 = sphi 0, %s191
    $region4: #{tpu_custom_call.1} parent=1 // loop_header_branch
      %18 = sbr.rel (%p16) target = $region8
    $region5: #{tpu_custom_call.1} parent=1 // loop_body
      %s20 = ssub.s32 %s15, 1
      %s21 = ssub.s32 %s15, 2
      %s28 = sadd.s32 1, %s23
      %p29 = scmp.ge.s32.totalorder %s28, 1
      %s30 = scalar_select %p29, 0, %s28
      %s31 = sadd.s32 1, %s22
      %s32 = scalar_select %p29, %s31, %s22
      %p33 = scmp.ge.s32.totalorder %s32, 2
      %s34 = scalar_select %p33, 0, %s32
      %s35 = ssub.s32 %s22, %s34
      %s36 = ssub.s32 %s23, %s30
      %s37 = sor.u32 %s35, %s36
      %p38 = scmp.eq.s32.totalorder %s37, 0
      %s40 = sadd.s32 %s39, 1
      %s41 = scalar_select %p38, %s39, %s40
      %p44 = pneg %p38
      %p45 = scmp.eq.s32.totalorder %s15, 1
      %p46 = por %p44, %p45
      %p47 = scmp.ne.s32.totalorder %s39, %s42
      %p48 = scmp.eq.s32.totalorder %s15, 0
      %p49 = por %p47, %p48
      %p50 = scmp.ne.s32.totalorder %s39, %s42
      %p51 = scmp.eq.s32.totalorder %s20, 1
      %p52 = por %p50, %p51
      %p53 = scmp.ne.s32.totalorder %s42, %s43
      %p54 = scmp.eq.s32.totalorder %s20, 0
      %p55 = por %p53, %p54
      %p56 = scmp.ne.s32.totalorder %s42, %s43
      %p57 = scmp.eq.s32.totalorder %s21, 1
      %p58 = por %p56, %p57
      %p60 = scmp.ne.s32.totalorder %s43, %s59
      %p61 = scmp.eq.s32.totalorder %s21, 0
      %p62 = por %p60, %p61
      %s63 = sadd.s32 %s23, 1
      %s64 = smul.u32 %s63, 16
      %p65 = scmp.lt.s32.totalorder %s64, 1
      %s66 = scalar_select %p65, %s64, 1
      %s67 = sadd.s32 %s30, 1
      %s68 = smul.u32 %s67, 16
      %p69 = scmp.lt.s32.totalorder %s68, 1
      %s70 = scalar_select %p69, %s68, 1
      %s71 = ssub.s32 %s22, %s34
      %s72 = ssub.s32 %s66, %s70
      %s73 = sor.u32 %s71, %s72
      %p74 = scmp.eq.s32.totalorder %s73, 0
      %s76 = sadd.s32 %s75, 1
      %s77 = scalar_select %p74, %s75, %s76
      %p80 = pneg %p74
      %p81 = scmp.eq.s32.totalorder %s15, 1
      %p82 = por %p80, %p81
      %p83 = scmp.ne.s32.totalorder %s75, %s78
      %p84 = scmp.eq.s32.totalorder %s15, 0
      %p85 = por %p83, %p84
      %p86 = scmp.ne.s32.totalorder %s75, %s78
      %p87 = scmp.eq.s32.totalorder %s20, 1
      %p88 = por %p86, %p87
      %p89 = scmp.ne.s32.totalorder %s78, %s79
      %p90 = scmp.eq.s32.totalorder %s20, 0
      %p91 = por %p89, %p90
      %p92 = scmp.ne.s32.totalorder %s78, %s79
      %p93 = scmp.eq.s32.totalorder %s21, 1
      %p94 = por %p92, %p93
      %p96 = scmp.ne.s32.totalorder %s79, %s95
      %p97 = scmp.eq.s32.totalorder %s21, 0
      %p98 = por %p96, %p97
      %s100 = sadd.s32 %s99, 1
      %p103 = scmp.eq.s32.totalorder %s15, 1
      %p104 = scmp.ne.s32.totalorder %s99, %s101
      %p105 = scmp.eq.s32.totalorder %s15, 0
      %p106 = por %p104, %p105
      %p107 = scmp.ne.s32.totalorder %s99, %s101
      %p108 = scmp.eq.s32.totalorder %s20, 1
      %p109 = por %p107, %p108
      %p110 = scmp.ne.s32.totalorder %s101, %s102
      %p111 = scmp.eq.s32.totalorder %s20, 0
      %p112 = por %p110, %p111
      %p113 = scmp.ne.s32.totalorder %s101, %s102
      %p114 = scmp.eq.s32.totalorder %s21, 1
      %p115 = por %p113, %p114
      %p117 = scmp.ne.s32.totalorder %s102, %s116
      %p118 = scmp.eq.s32.totalorder %s21, 0
      %p119 = por %p117, %p118
      %s121 = sadd.s32 %s120, 1
      %p124 = scmp.eq.s32.totalorder %s15, 1
      %p125 = scmp.ne.s32.totalorder %s120, %s122
      %p126 = scmp.eq.s32.totalorder %s15, 0
      %p127 = por %p125, %p126
      %p128 = scmp.ne.s32.totalorder %s120, %s122
      %p129 = scmp.eq.s32.totalorder %s20, 1
      %p130 = por %p128, %p129
      %p131 = scmp.ne.s32.totalorder %s122, %s123
      %p132 = scmp.eq.s32.totalorder %s20, 0
      %p133 = por %p131, %p132
      %p134 = scmp.ne.s32.totalorder %s122, %s123
      %p135 = scmp.eq.s32.totalorder %s21, 1
      %p136 = por %p134, %p135
      %p138 = scmp.ne.s32.totalorder %s123, %s137
      %p139 = scmp.eq.s32.totalorder %s21, 0
      %p140 = por %p138, %p139
      %s142 = sadd.s32 %s141, 1
      %p145 = scmp.eq.s32.totalorder %s15, 1
      %p146 = scmp.ne.s32.totalorder %s141, %s143
      %p147 = scmp.eq.s32.totalorder %s15, 0
      %p148 = por %p146, %p147
      %p149 = scmp.ne.s32.totalorder %s141, %s143
      %p150 = scmp.eq.s32.totalorder %s20, 1
      %p151 = por %p149, %p150
      %p152 = scmp.ne.s32.totalorder %s143, %s144
      %p153 = scmp.eq.s32.totalorder %s20, 0
      %p154 = por %p152, %p153
      %p155 = scmp.ne.s32.totalorder %s143, %s144
      %p156 = scmp.eq.s32.totalorder %s21, 1
      %p157 = por %p155, %p156
      %p159 = scmp.ne.s32.totalorder %s144, %s158
      %p160 = scmp.eq.s32.totalorder %s21, 0
      %p161 = por %p159, %p160
      %s163 = sadd.s32 %s162, 1
      %p166 = scmp.eq.s32.totalorder %s15, 1
      %p167 = scmp.ne.s32.totalorder %s162, %s164
      %p168 = scmp.eq.s32.totalorder %s15, 0
      %p169 = por %p167, %p168
      %p170 = scmp.ne.s32.totalorder %s162, %s164
      %p171 = scmp.eq.s32.totalorder %s20, 1
      %p172 = por %p170, %p171
      %p173 = scmp.ne.s32.totalorder %s164, %s165
      %p174 = scmp.eq.s32.totalorder %s20, 0
      %p175 = por %p173, %p174
      %p176 = scmp.ne.s32.totalorder %s164, %s165
      %p177 = scmp.eq.s32.totalorder %s21, 1
      %p178 = por %p176, %p177
      %p180 = scmp.ne.s32.totalorder %s165, %s179
      %p181 = scmp.eq.s32.totalorder %s21, 0
      %p182 = por %p180, %p181
      %s183 = ssub.s32 %s22, %s34
      %s184 = ssub.s32 %s23, %s30
      %s185 = sor.u32 %s183, %s184
      %p186 = scmp.eq.s32.totalorder %s185, 0
      %s188 = sadd.s32 %s187, 1
      %s189 = scalar_select %p186, %s187, %s188
      %p192 = pneg %p186
      %p193 = scmp.eq.s32.totalorder %s15, 1
      %p194 = por %p192, %p193
      %p195 = scmp.ne.s32.totalorder %s187, %s190
      %p196 = scmp.eq.s32.totalorder %s15, 0
      %p197 = por %p195, %p196
      %p198 = scmp.ne.s32.totalorder %s187, %s190
      %p199 = scmp.eq.s32.totalorder %s20, 1
      %p200 = por %p198, %p199
      %p201 = scmp.ne.s32.totalorder %s190, %s191
      %p202 = scmp.eq.s32.totalorder %s20, 0
      %p203 = por %p201, %p202
      %p204 = scmp.ne.s32.totalorder %s190, %s191
      %p205 = scmp.eq.s32.totalorder %s21, 1
      %p206 = por %p204, %p205
      %p208 = scmp.ne.s32.totalorder %s191, %s207
      %p209 = scmp.eq.s32.totalorder %s21, 0
      %p210 = por %p208, %p209
      %p211 = scmp.le.s32.totalorder 1, %s15
      %p212 = scmp.lt.s32.totalorder %s15, 3
      %p213 = pnand %p211, %p212
      %p214 = pneg %p213
      // Predicated region
      $region9: #{tpu_custom_call.1} parent=5 // pred_check
        _
      $region10: #{tpu_custom_call.1} parent=5 // pred_check_branch
        %216 = sbr.rel (%p213) target = $region12
      $region11: #{tpu_custom_call.1} parent=5 // pred_region
        %s217 = ssub.s32 %s15, 1
        // Predicated region
        $region13: #{tpu_custom_call.1} parent=11 // pred_check
          %p218 = pneg %p112
        $region14: #{tpu_custom_call.1} parent=11 // pred_check_branch
          %220 = sbr.rel (%p218) target = $region16
        $region15: #{tpu_custom_call.1} parent=11 // pred_region
          _
        $region16: #{tpu_custom_call.1} parent=11 // pred_fallthru
          _
        // Predicated region
        $region17: #{tpu_custom_call.1} parent=11 // pred_check
          %p221 = pneg %p133
        $region18: #{tpu_custom_call.1} parent=11 // pred_check_branch
          %223 = sbr.rel (%p221) target = $region20
        $region19: #{tpu_custom_call.1} parent=11 // pred_region
          _
        $region20: #{tpu_custom_call.1} parent=11 // pred_fallthru
          _
        // Predicated region
        $region21: #{tpu_custom_call.1} parent=11 // pred_check
          %p224 = pneg %p154
        $region22: #{tpu_custom_call.1} parent=11 // pred_check_branch
          %226 = sbr.rel (%p224) target = $region24
        $region23: #{tpu_custom_call.1} parent=11 // pred_region
          _
        $region24: #{tpu_custom_call.1} parent=11 // pred_fallthru
          _
        // Predicated region
        $region25: #{tpu_custom_call.1} parent=11 // pred_check
          %p227 = pneg %p175
        $region26: #{tpu_custom_call.1} parent=11 // pred_check_branch
          %229 = sbr.rel (%p227) target = $region28
        $region27: #{tpu_custom_call.1} parent=11 // pred_region
          _
        $region28: #{tpu_custom_call.1} parent=11 // pred_fallthru
          _
      $region12: #{tpu_custom_call.1} parent=5 // pred_fallthru
        _
      %p230 = scmp.lt.s32.totalorder %s15, 2
      // Predicated region
      $region29: #{tpu_custom_call.1} parent=5 // pred_check
        %p231 = pneg %p230
      $region30: #{tpu_custom_call.1} parent=5 // pred_check_branch
        %233 = sbr.rel (%p231) target = $region32
      $region31: #{tpu_custom_call.1} parent=5 // pred_region
        // Predicated region
        $region33: #{tpu_custom_call.1} parent=31 // pred_check
          %p234 = pneg %p49
        $region34: #{tpu_custom_call.1} parent=31 // pred_check_branch
          %236 = sbr.rel (%p234) target = $region36
        $region35: #{tpu_custom_call.1} parent=31 // pred_region
          %s237 = sand.u32 %s39, 1
          %s238 = sand.u32 %s39, 1
          %s239 = smul.addr %s238, 256
          %s240 = scalar_lea.vmem [#allocation2], %s239
          %s241 = smul.u32 2, %s22
          %s242 = smul.u32 16, %s23
          %s243 = ssub.s32 2, %s242
          %s244 = smul.u32 16, %s243
          %p245 = scmp.ne.s32.totalorder 0, %s244
          %s246 = smul.addr %s241, 2
          %s247 = sadd.s32 %s242, %s246
          %s248 = smul.addr %s247, 8
          %s249 = scalar_lea.vmem %s0, %s248
          // Predicated region
          $region37: #{tpu_custom_call.1} parent=35 // pred_check
            %p250 = pneg %p245
          $region38: #{tpu_custom_call.1} parent=35 // pred_check_branch
            %252 = sbr.rel (%p250) target = $region40
          $region39: #{tpu_custom_call.1} parent=35 // pred_region
            // Predicated region
            $region41: #{tpu_custom_call.1} parent=39 // pred_check
              _
            $region42: #{tpu_custom_call.1} parent=39 // pred_check_branch
              %254 = sbr.rel (0) target = $region44
            $region43: #{tpu_custom_call.1} parent=39 // pred_region
              // Predicated region
              $region63: #{tpu_custom_call.1} parent=43 // pred_check
                _
              $region64: #{tpu_custom_call.1} parent=43 // pred_check_branch
                %312 = sbr.rel (0) target = $region66
              $region65: #{tpu_custom_call.1} parent=43 // pred_region
                %s313 = sshrl.u32 %s243, 1
                // While loop
                $region67: #{tpu_custom_call.1} parent=65 // loop_pre_header
                  _
                $region68: #{tpu_custom_call.1} parent=65 // loop_header
                  %s315 = sphi 0, %s317
                  %p316 = scmp.ge.s32.totalorder %s315, %s313
                  %s320 = sphi 0, %s333
                  %s321 = sphi %s249, %s336
                  %s322 = sphi %s240, %s337
                $region69: #{tpu_custom_call.1} parent=65 // loop_header_branch
                  %319 = sbr.rel (%p316) target = $region73
                $region70: #{tpu_custom_call.1} parent=65 // loop_body
                  %v323 = vld [vmem:[%s321] sm:$0xff]
                  %324 = vst [vmem:[%s322] sm:$0xff] %v323
                  %v325 = vld [vmem:[%s321 + $0x8] sm:$0xff]
                  %326 = vst [vmem:[%s322 + $0x8] sm:$0xff] %v325
                  %v327 = vld [vmem:[%s321 + $0x10] sm:$0xff]
                  %328 = vst [vmem:[%s322 + $0x80] sm:$0xff] %v327
                  %v329 = vld [vmem:[%s321 + $0x18] sm:$0xff]
                  %330 = vst [vmem:[%s322 + $0x88] sm:$0xff] %v329
                  %s331 = sadd.s32 1, %s320
                  %p332 = scmp.ge.s32.totalorder %s331, %s313
                  %s333 = scalar_select %p332, 0, %s331
                  %s334 = smul.u32 %s333, 16
                  %s335 = smul.u32 %s333, 16
                  %s336 = scalar_lea.vmem %s249, %s334
                  %s337 = scalar_lea.vmem %s240, %s335 [#allocation2]
                $region71: #{tpu_custom_call.1} parent=65 // loop_footer
                  %s317 = sadd.s32 %s315, 1
                $region72: #{tpu_custom_call.1} parent=65 // loop_footer_branch
                  %314 = sbr.rel target = $region68
                $region73: #{tpu_custom_call.1} parent=65 // loop_exit
                  _
                %s338 = sshrl.u32 %s243, 1
                %s339 = sand.u32 %s243, 1
                %s340 = smul.u32 %s338, 2
                %s341 = smul.u32 8, %s340
                %s342 = scalar_lea.vmem %s249, %s341
                %s343 = smul.u32 8, %s340
                %s344 = scalar_lea.vmem %s240, %s343 [#allocation2]
                // While loop
                $region74: #{tpu_custom_call.1} parent=65 // loop_pre_header
                  _
                $region75: #{tpu_custom_call.1} parent=65 // loop_header
                  %s346 = sphi 0, %s348
                  %p347 = scmp.ge.s32.totalorder %s346, %s339
                  %s351 = sphi 0, %s360
                  %s352 = sphi %s342, %s363
                  %s353 = sphi %s344, %s364
                $region76: #{tpu_custom_call.1} parent=65 // loop_header_branch
                  %350 = sbr.rel (%p347) target = $region80
                $region77: #{tpu_custom_call.1} parent=65 // loop_body
                  %v354 = vld [vmem:[%s352] sm:$0xff]
                  %355 = vst [vmem:[%s353] sm:$0xff] %v354
                  %v356 = vld [vmem:[%s352 + $0x10] sm:$0xff]
                  %357 = vst [vmem:[%s353 + $0x80] sm:$0xff] %v356
                  %s358 = sadd.s32 1, %s351
                  %p359 = scmp.ge.s32.totalorder %s358, %s339
                  %s360 = scalar_select %p359, 0, %s358
                  %s361 = smul.u32 %s360, 8
                  %s362 = smul.u32 %s360, 8
                  %s363 = scalar_lea.vmem %s342, %s361
                  %s364 = scalar_lea.vmem %s344, %s362 [#allocation2]
                $region78: #{tpu_custom_call.1} parent=65 // loop_footer
                  %s348 = sadd.s32 %s346, 1
                $region79: #{tpu_custom_call.1} parent=65 // loop_footer_branch
                  %345 = sbr.rel target = $region75
                $region80: #{tpu_custom_call.1} parent=65 // loop_exit
                  _
              $region66: #{tpu_custom_call.1} parent=43 // pred_fallthru
                _
              // Predicated region
              $region81: #{tpu_custom_call.1} parent=43 // pred_check
                _
              $region82: #{tpu_custom_call.1} parent=43 // pred_check_branch
                %366 = sbr.rel target = $region84
              $region83: #{tpu_custom_call.1} parent=43 // pred_region
                _
              $region84: #{tpu_custom_call.1} parent=43 // pred_fallthru
                _
            $region44: #{tpu_custom_call.1} parent=39 // pred_fallthru
              _
            // Predicated region
            $region45: #{tpu_custom_call.1} parent=39 // pred_check
              _
            $region46: #{tpu_custom_call.1} parent=39 // pred_check_branch
              %256 = sbr.rel target = $region48
            $region47: #{tpu_custom_call.1} parent=39 // pred_region
              %s258 = ssub.s32 256, 1
              %s259 = sshrl.u32 %s243, 1
              // While loop
              $region49: #{tpu_custom_call.1} parent=47 // loop_pre_header
                _
              $region50: #{tpu_custom_call.1} parent=47 // loop_header
                %s261 = sphi 0, %s263
                %p262 = scmp.ge.s32.totalorder %s261, %s259
                %s266 = sphi 0, %s279
                %s267 = sphi %s249, %s282
                %s268 = sphi %s240, %s283
              $region51: #{tpu_custom_call.1} parent=47 // loop_header_branch
                %265 = sbr.rel (%p262) target = $region55
              $region52: #{tpu_custom_call.1} parent=47 // loop_body
                %v269 = vld [vmem:[%s267] sm:%s258]
                %270 = vst [vmem:[%s268] sm:%s258] %v269
                %v271 = vld [vmem:[%s267 + $0x8] sm:%s258]
                %272 = vst [vmem:[%s268 + $0x8] sm:%s258] %v271
                %v273 = vld [vmem:[%s267 + $0x10] sm:%s258]
                %274 = vst [vmem:[%s268 + $0x80] sm:%s258] %v273
                %v275 = vld [vmem:[%s267 + $0x18] sm:%s258]
                %276 = vst [vmem:[%s268 + $0x88] sm:%s258] %v275
                %s277 = sadd.s32 1, %s266
                %p278 = scmp.ge.s32.totalorder %s277, %s259
                %s279 = scalar_select %p278, 0, %s277
                %s280 = smul.u32 %s279, 16
                %s281 = smul.u32 %s279, 16
                %s282 = scalar_lea.vmem %s249, %s280
                %s283 = scalar_lea.vmem %s240, %s281 [#allocation2]
              $region53: #{tpu_custom_call.1} parent=47 // loop_footer
                %s263 = sadd.s32 %s261, 1
              $region54: #{tpu_custom_call.1} parent=47 // loop_footer_branch
                %260 = sbr.rel target = $region50
              $region55: #{tpu_custom_call.1} parent=47 // loop_exit
                _
              %s284 = sshrl.u32 %s243, 1
              %s285 = sand.u32 %s243, 1
              %s286 = smul.u32 %s284, 2
              %s287 = smul.u32 8, %s286
              %s288 = scalar_lea.vmem %s249, %s287
              %s289 = smul.u32 8, %s286
              %s290 = scalar_lea.vmem %s240, %s289 [#allocation2]
              // While loop
              $region56: #{tpu_custom_call.1} parent=47 // loop_pre_header
                _
              $region57: #{tpu_custom_call.1} parent=47 // loop_header
                %s292 = sphi 0, %s294
                %p293 = scmp.ge.s32.totalorder %s292, %s285
                %s297 = sphi 0, %s306
                %s298 = sphi %s288, %s309
                %s299 = sphi %s290, %s310
              $region58: #{tpu_custom_call.1} parent=47 // loop_header_branch
                %296 = sbr.rel (%p293) target = $region62
              $region59: #{tpu_custom_call.1} parent=47 // loop_body
                %v300 = vld [vmem:[%s298] sm:%s258]
                %301 = vst [vmem:[%s299] sm:%s258] %v300
                %v302 = vld [vmem:[%s298 + $0x10] sm:%s258]
                %303 = vst [vmem:[%s299 + $0x80] sm:%s258] %v302
                %s304 = sadd.s32 1, %s297
                %p305 = scmp.ge.s32.totalorder %s304, %s285
                %s306 = scalar_select %p305, 0, %s304
                %s307 = smul.u32 %s306, 8
                %s308 = smul.u32 %s306, 8
                %s309 = scalar_lea.vmem %s288, %s307
                %s310 = scalar_lea.vmem %s290, %s308 [#allocation2]
              $region60: #{tpu_custom_call.1} parent=47 // loop_footer
                %s294 = sadd.s32 %s292, 1
              $region61: #{tpu_custom_call.1} parent=47 // loop_footer_branch
                %291 = sbr.rel target = $region57
              $region62: #{tpu_custom_call.1} parent=47 // loop_exit
                _
            $region48: #{tpu_custom_call.1} parent=39 // pred_fallthru
              _
          $region40: #{tpu_custom_call.1} parent=35 // pred_fallthru
            _
          %367 = vnop
        $region36: #{tpu_custom_call.1} parent=31 // pred_fallthru
          _
        // Predicated region
        $region85: #{tpu_custom_call.1} parent=31 // pred_check
          %p368 = pneg %p85
        $region86: #{tpu_custom_call.1} parent=31 // pred_check_branch
          %370 = sbr.rel (%p368) target = $region88
        $region87: #{tpu_custom_call.1} parent=31 // pred_region
          %s371 = sand.u32 %s75, 1
          %s372 = sand.u32 %s75, 1
          %s373 = smul.addr %s372, 16
          %s374 = scalar_lea.vmem [#allocation3], %s373
          %s375 = sadd.s32 %s23, 1
          %s376 = smul.u32 %s375, 16
          %p377 = scmp.lt.s32.totalorder %s376, 1
          %s378 = scalar_select %p377, %s376, 1
          %s379 = smul.u32 2, %s22
          %s380 = smul.addr %s379, 2
          %s381 = sadd.s32 %s378, %s380
          %s382 = smul.addr %s381, 8
          %s383 = scalar_lea.vmem %s1, %s382
          // Predicated region
          $region89: #{tpu_custom_call.1} parent=87 // pred_check
            _
          $region90: #{tpu_custom_call.1} parent=87 // pred_check_branch
            %385 = sbr.rel (0) target = $region92
          $region91: #{tpu_custom_call.1} parent=87 // pred_region
            // Predicated region
            $region93: #{tpu_custom_call.1} parent=91 // pred_check
              _
            $region94: #{tpu_custom_call.1} parent=91 // pred_check_branch
              %387 = sbr.rel (0) target = $region96
            $region95: #{tpu_custom_call.1} parent=91 // pred_region
              // Predicated region
              $region108: #{tpu_custom_call.1} parent=95 // pred_check
                _
              $region109: #{tpu_custom_call.1} parent=95 // pred_check_branch
                %405 = sbr.rel (0) target = $region111
              $region110: #{tpu_custom_call.1} parent=95 // pred_region
                loop: start=0, step=1, limit=1
                $region112: #{tpu_custom_call.1} parent=110 // loop_pre_header
                  _
                $region113: #{tpu_custom_call.1} parent=110 // loop_header
                  %s407 = sphi 0, %s411
                  %p408 = scmp.ge.s32.totalorder %s407, 1
                  %s412 = sphi %s383, %s383
                  %s413 = sphi %s374, %s374
                $region114: #{tpu_custom_call.1} parent=110 // loop_header_branch
                  %410 = sbr.rel (%p408) target = $region118
                $region115: #{tpu_custom_call.1} parent=110 // loop_body
                  %v414 = vld [vmem:[%s412] sm:$0xff]
                  %415 = vst [vmem:[%s413] sm:$0xff] %v414
                  %v416 = vld [vmem:[%s412 + $0x10] sm:$0xff]
                  %417 = vst [vmem:[%s413 + $0x8] sm:$0xff] %v416
                $region116: #{tpu_custom_call.1} parent=110 // loop_footer
                  %s411 = sadd.s32 1, %s407
                $region117: #{tpu_custom_call.1} parent=110 // loop_footer_branch
                  %406 = sbr.rel target = $region113
                $region118: #{tpu_custom_call.1} parent=110 // loop_exit
                  _
              $region111: #{tpu_custom_call.1} parent=95 // pred_fallthru
                _
              // Predicated region
              $region119: #{tpu_custom_call.1} parent=95 // pred_check
                _
              $region120: #{tpu_custom_call.1} parent=95 // pred_check_branch
                %419 = sbr.rel target = $region122
              $region121: #{tpu_custom_call.1} parent=95 // pred_region
                _
              $region122: #{tpu_custom_call.1} parent=95 // pred_fallthru
                _
            $region96: #{tpu_custom_call.1} parent=91 // pred_fallthru
              _
            // Predicated region
            $region97: #{tpu_custom_call.1} parent=91 // pred_check
              _
            $region98: #{tpu_custom_call.1} parent=91 // pred_check_branch
              %389 = sbr.rel target = $region100
            $region99: #{tpu_custom_call.1} parent=91 // pred_region
              %s391 = ssub.s32 256, 1
              loop: start=0, step=1, limit=1
              $region101: #{tpu_custom_call.1} parent=99 // loop_pre_header
                _
              $region102: #{tpu_custom_call.1} parent=99 // loop_header
                %s393 = sphi 0, %s397
                %p394 = scmp.ge.s32.totalorder %s393, 1
                %s398 = sphi %s383, %s383
                %s399 = sphi %s374, %s374
              $region103: #{tpu_custom_call.1} parent=99 // loop_header_branch
                %396 = sbr.rel (%p394) target = $region107
              $region104: #{tpu_custom_call.1} parent=99 // loop_body
                %v400 = vld [vmem:[%s398] sm:%s391]
                %401 = vst [vmem:[%s399] sm:%s391] %v400
                %v402 = vld [vmem:[%s398 + $0x10] sm:%s391]
                %403 = vst [vmem:[%s399 + $0x8] sm:%s391] %v402
              $region105: #{tpu_custom_call.1} parent=99 // loop_footer
                %s397 = sadd.s32 1, %s393
              $region106: #{tpu_custom_call.1} parent=99 // loop_footer_branch
                %392 = sbr.rel target = $region102
              $region107: #{tpu_custom_call.1} parent=99 // loop_exit
                _
            $region100: #{tpu_custom_call.1} parent=91 // pred_fallthru
              _
          $region92: #{tpu_custom_call.1} parent=87 // pred_fallthru
            _
          %420 = vnop
        $region88: #{tpu_custom_call.1} parent=31 // pred_fallthru
          _
      $region32: #{tpu_custom_call.1} parent=5 // pred_fallthru
        _
      %p421 = scmp.le.s32.totalorder 1, %s15
      %p422 = scmp.lt.s32.totalorder %s15, 3
      %p423 = pnand %p421, %p422
      %p424 = pneg %p423
      // Predicated region
      $region123: #{tpu_custom_call.1} parent=5 // pred_check
        _
      $region124: #{tpu_custom_call.1} parent=5 // pred_check_branch
        %426 = sbr.rel (%p423) target = $region126
      $region125: #{tpu_custom_call.1} parent=5 // pred_region
        %s427 = ssub.s32 %s15, 1
        %s428 = sand.u32 %s42, 1
        %s429 = sand.u32 %s42, 1
        %s430 = smul.addr %s429, 256
        %s431 = scalar_lea.vmem [#allocation2], %s430
        // Predicated region
        $region127: #{tpu_custom_call.1} parent=125 // pred_check
          %p432 = pneg %p55
        $region128: #{tpu_custom_call.1} parent=125 // pred_check_branch
          %434 = sbr.rel (%p432) target = $region130
        $region129: #{tpu_custom_call.1} parent=125 // pred_region
          _
        $region130: #{tpu_custom_call.1} parent=125 // pred_fallthru
          _
        %s435 = sand.u32 %s78, 1
        %s436 = sand.u32 %s78, 1
        %s437 = smul.addr %s436, 16
        %s438 = scalar_lea.vmem [#allocation3], %s437
        // Predicated region
        $region131: #{tpu_custom_call.1} parent=125 // pred_check
          %p439 = pneg %p91
        $region132: #{tpu_custom_call.1} parent=125 // pred_check_branch
          %441 = sbr.rel (%p439) target = $region134
        $region133: #{tpu_custom_call.1} parent=125 // pred_region
          _
        $region134: #{tpu_custom_call.1} parent=125 // pred_fallthru
          _
        %s442 = sand.u32 %s42, 1
        %s443 = sand.u32 %s42, 1
        %s444 = smul.addr %s443, 256
        %s445 = scalar_lea.vmem [#allocation2], %s444
        %p446 = pneg %p55
        %p447 = pneg %p52
        %s448 = sand.u32 %s78, 1
        %s449 = sand.u32 %s78, 1
        %s450 = smul.addr %s449, 16
        %s451 = scalar_lea.vmem [#allocation3], %s450
        %p452 = pneg %p91
        %p453 = pneg %p88
        %p454 = pneg %p112
        %p455 = pneg %p109
        %p456 = pneg %p133
        %p457 = pneg %p130
        %p458 = pneg %p154
        %p459 = pneg %p151
        %p460 = pneg %p175
        %p461 = pneg %p172
        %p462 = pneg %p203
        %p463 = pneg %p200
        %s464 = sand.u32 %s190, 1
        %s465 = scalar_lea.sflag [#allocation5], %s464
        %s466 = sand.u32 %s190, 1
        %s467 = smul.addr %s466, 2
        %s468 = scalar_lea.vmem [#allocation4], %s467
        %s469 = smul.u32 2, %s24
        %s470 = smul.u32 16, %s25
        %s471 = ssub.s32 2, %s470
        %s472 = smul.u32 16, %s471
        %s473 = sadd.s32 %s25, 1
        %s474 = smul.u32 %s473, 16
        %p475 = scmp.lt.s32.totalorder %s474, 1
        %s476 = scalar_select %p475, %s474, 1
        %s477 = smul.u32 2, %s24
        %s478 = smul.u32 2, %s24
        %v480 = vld [vmem:[%s431] sm:$0xff]
        %v481 = vld [vmem:[%s431 + $0x8] sm:$0xff]
        %v482 = vld [vmem:[%s431 + $0x10] sm:$0xff]
        %v483 = vld [vmem:[%s431 + $0x18] sm:$0xff]
        %v484 = vld [vmem:[%s431 + $0x20] sm:$0xff]
        %v485 = vld [vmem:[%s431 + $0x28] sm:$0xff]
        %v486 = vld [vmem:[%s431 + $0x30] sm:$0xff]
        %v487 = vld [vmem:[%s431 + $0x38] sm:$0xff]
        %v488 = vld [vmem:[%s431 + $0x40] sm:$0xff]
        %v489 = vld [vmem:[%s431 + $0x48] sm:$0xff]
        %v490 = vld [vmem:[%s431 + $0x50] sm:$0xff]
        %v491 = vld [vmem:[%s431 + $0x58] sm:$0xff]
        %v492 = vld [vmem:[%s431 + $0x60] sm:$0xff]
        %v493 = vld [vmem:[%s431 + $0x68] sm:$0xff]
        %v494 = vld [vmem:[%s431 + $0x70] sm:$0xff]
        %v495 = vld [vmem:[%s431 + $0x78] sm:$0xff]
        %v496 = vld [vmem:[%s438] sm:$0xff]
        %497 = vxpose.xlu0.b32.start [1/16] %v480, 128
        %498 = vxpose.xlu0.b32.cont [2/16] %v481, 128
        %499 = vxpose.xlu0.b32.cont [3/16] %v482, 128
        %500 = vxpose.xlu0.b32.cont [4/16] %v483, 128
        %501 = vxpose.xlu0.b32.cont [5/16] %v484, 128
        %502 = vxpose.xlu0.b32.cont [6/16] %v485, 128
        %503 = vxpose.xlu0.b32.cont [7/16] %v486, 128
        %504 = vxpose.xlu0.b32.cont [8/16] %v487, 128
        %505 = vxpose.xlu0.b32.cont [9/16] %v488, 128
        %506 = vxpose.xlu0.b32.cont [10/16] %v489, 128
        %507 = vxpose.xlu0.b32.cont [11/16] %v490, 128
        %508 = vxpose.xlu0.b32.cont [12/16] %v491, 128
        %509 = vxpose.xlu0.b32.cont [13/16] %v492, 128
        %510 = vxpose.xlu0.b32.cont [14/16] %v493, 128
        %511 = vxpose.xlu0.b32.cont [15/16] %v494, 128
        %512 = vxpose.xlu0.b32.end [16/16] %v495, 128
        %v513 = vpop.trf.xlu0
        %v514 = vpop.trf.xlu0
        %v515 = vpop.trf.xlu0
        %v516 = vpop.trf.xlu0
        %v517 = vpop.trf.xlu0
        %v518 = vpop.trf.xlu0
        %v519 = vpop.trf.xlu0
        %v520 = vpop.trf.xlu0
        %v521 = vpop.trf.xlu0
        %v522 = vpop.trf.xlu0
        %v523 = vpop.trf.xlu0
        %v524 = vpop.trf.xlu0
        %v525 = vpop.trf.xlu0
        %v526 = vpop.trf.xlu0
        %v527 = vpop.trf.xlu0
        %v528 = vpop.trf.xlu0
        %529 = vxpose.xlu0.b32.start [1/16] %v496, 128
        %530 = vxpose.xlu0.b32.cont [2/16] 0.0, 128
        %531 = vxpose.xlu0.b32.cont [3/16] 0.0, 128
        %532 = vxpose.xlu0.b32.cont [4/16] 0.0, 128
        %533 = vxpose.xlu0.b32.cont [5/16] 0.0, 128
        %534 = vxpose.xlu0.b32.cont [6/16] 0.0, 128
        %535 = vxpose.xlu0.b32.cont [7/16] 0.0, 128
        %536 = vxpose.xlu0.b32.cont [8/16] 0.0, 128
        %537 = vxpose.xlu0.b32.cont [9/16] 0.0, 128
        %538 = vxpose.xlu0.b32.cont [10/16] 0.0, 128
        %539 = vxpose.xlu0.b32.cont [11/16] 0.0, 128
        %540 = vxpose.xlu0.b32.cont [12/16] 0.0, 128
        %541 = vxpose.xlu0.b32.cont [13/16] 0.0, 128
        %542 = vxpose.xlu0.b32.cont [14/16] 0.0, 128
        %543 = vxpose.xlu0.b32.cont [15/16] 0.0, 128
        %544 = vxpose.xlu0.b32.end [16/16] 0.0, 128
        %v545 = vpop.trf.xlu0
        %v546 = vpop.trf.xlu0
        %v547 = vpop.trf.xlu0
        %v548 = vpop.trf.xlu0
        %v549 = vpop.trf.xlu0
        %v550 = vpop.trf.xlu0
        %v551 = vpop.trf.xlu0
        %v552 = vpop.trf.xlu0
        %v553 = vpop.trf.xlu0
        %v554 = vpop.trf.xlu0
        %v555 = vpop.trf.xlu0
        %v556 = vpop.trf.xlu0
        %v557 = vpop.trf.xlu0
        %v558 = vpop.trf.xlu0
        %v559 = vpop.trf.xlu0
        %v560 = vpop.trf.xlu0
        %v561 = vpack.c.bf16 %v545, %v513
        %v563 = vunpack.c.l.b16 %v561
        %v564 = vunpack.c.h.b16 %v561
        %v565 = vpack.c.b16 %v563, %v563
        %v566 = vpack.c.b16 %v564, %v564
        %v567 = vrot.slane %v565, 6
        %v568 = vrot.slane %v566, 6
        %569 = vrot.lane.b32.xlu0 %v567, 127
        %v570 = vpop.permute.xlu0 %569
        %571 = vrot.lane.b32.xlu0 %v568, 127
        %v572 = vpop.permute.xlu0 %571
        %vm573 = vcmask 1039360
        %v574 = vsel %vm573, %v570, %v572
        %575 = vrot.lane.b32.xlu0 %v565, 126
        %v576 = vpop.permute.xlu0 %575
        %577 = vrot.lane.b32.xlu0 %v566, 126
        %v578 = vpop.permute.xlu0 %577
        %vm579 = vcmask 1031168
        %v580 = vsel %vm579, %v576, %v578
        %vm581 = vcmask 1041408
        %v584 = vsel %vm581, %v561, %v574
        %vm585 = vcmask 1043456
        %v587 = vsel %vm585, %v584, %v580
        %s588 = scalar_lea.vmem %s431, 128 [#allocation2]
        %v589 = vld [vmem:[%s588] sm:$0xff]
        %v590 = vld [vmem:[%s588 + $0x8] sm:$0xff]
        %v591 = vld [vmem:[%s588 + $0x10] sm:$0xff]
        %v592 = vld [vmem:[%s588 + $0x18] sm:$0xff]
        %v593 = vld [vmem:[%s588 + $0x20] sm:$0xff]
        %v594 = vld [vmem:[%s588 + $0x28] sm:$0xff]
        %v595 = vld [vmem:[%s588 + $0x30] sm:$0xff]
        %v596 = vld [vmem:[%s588 + $0x38] sm:$0xff]
        %v597 = vld [vmem:[%s588 + $0x40] sm:$0xff]
        %v598 = vld [vmem:[%s588 + $0x48] sm:$0xff]
        %v599 = vld [vmem:[%s588 + $0x50] sm:$0xff]
        %v600 = vld [vmem:[%s588 + $0x58] sm:$0xff]
        %v601 = vld [vmem:[%s588 + $0x60] sm:$0xff]
        %v602 = vld [vmem:[%s588 + $0x68] sm:$0xff]
        %v603 = vld [vmem:[%s588 + $0x70] sm:$0xff]
        %v604 = vld [vmem:[%s588 + $0x78] sm:$0xff]
        %s605 = scalar_lea.vmem %s438, 8 [#allocation3]
        %v606 = vld [vmem:[%s605] sm:$0xff]
        %607 = vxpose.xlu0.b32.start [1/16] %v589, 128
        %608 = vxpose.xlu0.b32.cont [2/16] %v590, 128
        %609 = vxpose.xlu0.b32.cont [3/16] %v591, 128
        %610 = vxpose.xlu0.b32.cont [4/16] %v592, 128
        %611 = vxpose.xlu0.b32.cont [5/16] %v593, 128
        %612 = vxpose.xlu0.b32.cont [6/16] %v594, 128
        %613 = vxpose.xlu0.b32.cont [7/16] %v595, 128
        %614 = vxpose.xlu0.b32.cont [8/16] %v596, 128
        %615 = vxpose.xlu0.b32.cont [9/16] %v597, 128
        %616 = vxpose.xlu0.b32.cont [10/16] %v598, 128
        %617 = vxpose.xlu0.b32.cont [11/16] %v599, 128
        %618 = vxpose.xlu0.b32.cont [12/16] %v600, 128
        %619 = vxpose.xlu0.b32.cont [13/16] %v601, 128
        %620 = vxpose.xlu0.b32.cont [14/16] %v602, 128
        %621 = vxpose.xlu0.b32.cont [15/16] %v603, 128
        %622 = vxpose.xlu0.b32.end [16/16] %v604, 128
        %v623 = vpop.trf.xlu0
        %v624 = vpop.trf.xlu0
        %v625 = vpop.trf.xlu0
        %v626 = vpop.trf.xlu0
        %v627 = vpop.trf.xlu0
        %v628 = vpop.trf.xlu0
        %v629 = vpop.trf.xlu0
        %v630 = vpop.trf.xlu0
        %v631 = vpop.trf.xlu0
        %v632 = vpop.trf.xlu0
        %v633 = vpop.trf.xlu0
        %v634 = vpop.trf.xlu0
        %v635 = vpop.trf.xlu0
        %v636 = vpop.trf.xlu0
        %v637 = vpop.trf.xlu0
        %v638 = vpop.trf.xlu0
        %639 = vxpose.xlu0.b32.start [1/16] %v606, 128
        %640 = vxpose.xlu0.b32.cont [2/16] 0.0, 128
        %641 = vxpose.xlu0.b32.cont [3/16] 0.0, 128
        %642 = vxpose.xlu0.b32.cont [4/16] 0.0, 128
        %643 = vxpose.xlu0.b32.cont [5/16] 0.0, 128
        %644 = vxpose.xlu0.b32.cont [6/16] 0.0, 128
        %645 = vxpose.xlu0.b32.cont [7/16] 0.0, 128
        %646 = vxpose.xlu0.b32.cont [8/16] 0.0, 128
        %647 = vxpose.xlu0.b32.cont [9/16] 0.0, 128
        %648 = vxpose.xlu0.b32.cont [10/16] 0.0, 128
        %649 = vxpose.xlu0.b32.cont [11/16] 0.0, 128
        %650 = vxpose.xlu0.b32.cont [12/16] 0.0, 128
        %651 = vxpose.xlu0.b32.cont [13/16] 0.0, 128
        %652 = vxpose.xlu0.b32.cont [14/16] 0.0, 128
        %653 = vxpose.xlu0.b32.cont [15/16] 0.0, 128
        %654 = vxpose.xlu0.b32.end [16/16] 0.0, 128
        %v655 = vpop.trf.xlu0
        %v656 = vpop.trf.xlu0
        %v657 = vpop.trf.xlu0
        %v658 = vpop.trf.xlu0
        %v659 = vpop.trf.xlu0
        %v660 = vpop.trf.xlu0
        %v661 = vpop.trf.xlu0
        %v662 = vpop.trf.xlu0
        %v663 = vpop.trf.xlu0
        %v664 = vpop.trf.xlu0
        %v665 = vpop.trf.xlu0
        %v666 = vpop.trf.xlu0
        %v667 = vpop.trf.xlu0
        %v668 = vpop.trf.xlu0
        %v669 = vpop.trf.xlu0
        %v670 = vpop.trf.xlu0
        %v671 = vpack.c.bf16 %v655, %v623
        %v673 = vunpack.c.l.b16 %v671
        %v674 = vunpack.c.h.b16 %v671
        %v675 = vpack.c.b16 %v673, %v673
        %v676 = vpack.c.b16 %v674, %v674
        %v677 = vrot.slane %v675, 6
        %v678 = vrot.slane %v676, 6
        %679 = vrot.lane.b32.xlu0 %v677, 127
        %v680 = vpop.permute.xlu0 %679
        %681 = vrot.lane.b32.xlu0 %v678, 127
        %v682 = vpop.permute.xlu0 %681
        %v683 = vsel %vm573, %v680, %v682
        %684 = vrot.lane.b32.xlu0 %v675, 126
        %v685 = vpop.permute.xlu0 %684
        %686 = vrot.lane.b32.xlu0 %v676, 126
        %v687 = vpop.permute.xlu0 %686
        %v688 = vsel %vm579, %v685, %v687
        %v691 = vsel %vm581, %v671, %v683
        %v693 = vsel %vm585, %v691, %v688
        %v694 = vld [vmem:[%s2] sm:$0xf]
        %v695 = vld [vmem:[%s2 + $0x4] sm:$0xf]
        %v696 = vld [vmem:[%s2 + $0x8] sm:$0xf]
        %v697 = vld [vmem:[%s2 + $0xc] sm:$0xf]
        %v698 = vld [vmem:[%s5] sm:$0xff]
        %v699 = vld [vmem:[%s5 + $0x8] sm:$0xff]
        %v700 = vld [vmem:[%s5 + $0x10] sm:$0xff]
        %v701 = vld [vmem:[%s5 + $0x18] sm:$0xff]
        %703 = vset.pattern.permute.xlu0 0
        %704 = vperm.xlu0 %703, %v698
        %v705 = vpop.permute.xlu0 %704
        %708 = vset.pattern.permute.xlu0 0
        %709 = vperm.xlu0 %708, %v699
        %v710 = vpop.permute.xlu0 %709
        %713 = vset.pattern.permute.xlu0 0
        %714 = vperm.xlu0 %713, %v700
        %v715 = vpop.permute.xlu0 %714
        %718 = vset.pattern.permute.xlu0 0
        %719 = vperm.xlu0 %718, %v701
        %v720 = vpop.permute.xlu0 %719
        %v726 = vunpack.c.l.b16 %v694
        %v727 = vunpack.c.l.b16 %v695
        %v728 = vunpack.c.l.b16 %v696
        %v729 = vunpack.c.l.b16 %v697
        %v730 = vpack.c.b16 %v727, %v726
        %v731 = vpack.c.b16 %v729, %v728
        %vm732 = vcmask 97280
        %v734 = vsel %vm732, %v730, 0
        %v737 = vsel %vm732, %v731, 0
        %vm739 = vcmask 1045504
        %v740 = vsel %vm739, %v587, 0
        %v742 = vsel %vm739, %v693, 0
        %744 = vmatpush.bf16.msra.mxu0 0
        %745 = vmatpush.bf16.msra.mxu0 0
        %746 = vmatpush.bf16.msra.mxu0 0
        %747 = vmatpush.bf16.msra.mxu0 0
        %748 = vmatpush.bf16.msra.mxu0 0
        %749 = vmatpush.bf16.msra.mxu0 0
        %750 = vmatpush.bf16.msra.mxu0 0
        %751 = vmatpush.bf16.msra.mxu0 %v740
        %752 = vmatmul.bf16.gmra.mxu0 %v734
        %v753 = vpop.f32.mrf.mxu0
        %v754 = vadd.f32 %v705, %v753
        %v755 = vpop.f32.mrf.mxu0
        %v756 = vadd.f32 %v710, %v755
        %757 = vmatmul.bf16.gmra.mxu0 %v737
        %v758 = vpop.f32.mrf.mxu0
        %v759 = vadd.f32 %v715, %v758
        %v760 = vpop.f32.mrf.mxu0
        %v761 = vadd.f32 %v720, %v760
        %762 = vdwg.mxu0
        %763 = vmatpush.bf16.msra.mxu0 0
        %764 = vmatpush.bf16.msra.mxu0 0
        %765 = vmatpush.bf16.msra.mxu0 0
        %766 = vmatpush.bf16.msra.mxu0 0
        %767 = vmatpush.bf16.msra.mxu0 0
        %768 = vmatpush.bf16.msra.mxu0 0
        %769 = vmatpush.bf16.msra.mxu0 0
        %770 = vmatpush.bf16.msra.mxu0 %v742
        %771 = vmatmul.bf16.gmra.mxu0 %v734
        %v772 = vpop.f32.mrf.mxu0
        %v773 = vadd.f32 %v705, %v772
        %v774 = vpop.f32.mrf.mxu0
        %v775 = vadd.f32 %v710, %v774
        %776 = vmatmul.bf16.gmra.mxu0 %v737
        %v777 = vpop.f32.mrf.mxu0
        %v778 = vadd.f32 %v715, %v777
        %v779 = vpop.f32.mrf.mxu0
        %v780 = vadd.f32 %v720, %v779
        %781 = vdwg.mxu0
        %v782 = vmax.f32 %v754, 0.0
        %v783 = vmax.f32 %v773, 0.0
        %v784 = vmax.f32 %v756, 0.0
        %v785 = vmax.f32 %v775, 0.0
        %v786 = vmax.f32 %v759, 0.0
        %v787 = vmax.f32 %v778, 0.0
        %v788 = vmax.f32 %v761, 0.0
        %v789 = vmax.f32 %v780, 0.0
        %v790 = vld [vmem:[%s3] sm:$0xf]
        %v791 = vld [vmem:[%s3 + $0x4] sm:$0xf]
        %v792 = vld [vmem:[%s3 + $0x8] sm:$0xf]
        %v793 = vld [vmem:[%s3 + $0xc] sm:$0xf]
        %v794 = vpack.c.bf16 %v784, %v782
        %v795 = vpack.c.bf16 %v785, %v783
        %v796 = vpack.c.bf16 %v788, %v786
        %v797 = vpack.c.bf16 %v789, %v787
        %v798 = vld [vmem:[%s5 + $0x20] sm:$0xff]
        %v799 = vld [vmem:[%s5 + $0x28] sm:$0xff]
        %v800 = vld [vmem:[%s5 + $0x30] sm:$0xff]
        %v801 = vld [vmem:[%s5 + $0x38] sm:$0xff]
        %803 = vset.pattern.permute.xlu0 0
        %804 = vperm.xlu0 %803, %v798
        %v805 = vpop.permute.xlu0 %804
        %808 = vset.pattern.permute.xlu0 0
        %809 = vperm.xlu0 %808, %v799
        %v810 = vpop.permute.xlu0 %809
        %813 = vset.pattern.permute.xlu0 0
        %814 = vperm.xlu0 %813, %v800
        %v815 = vpop.permute.xlu0 %814
        %818 = vset.pattern.permute.xlu0 0
        %819 = vperm.xlu0 %818, %v801
        %v820 = vpop.permute.xlu0 %819
        %v826 = vunpack.c.l.b16 %v790
        %v827 = vunpack.c.l.b16 %v791
        %v828 = vunpack.c.l.b16 %v792
        %v829 = vunpack.c.l.b16 %v793
        %v830 = vpack.c.b16 %v827, %v826
        %v831 = vpack.c.b16 %v829, %v828
        %vm832 = vcmask 261120
        %v834 = vsel %vm832, %v830, 0
        %v837 = vsel %vm832, %v831, 0
        %839 = vmatpush.bf16.msra.mxu0 0
        %840 = vmatpush.bf16.msra.mxu0 0
        %841 = vmatpush.bf16.msra.mxu0 0
        %842 = vmatpush.bf16.msra.mxu0 0
        %843 = vmatpush.bf16.msra.mxu0 0
        %844 = vmatpush.bf16.msra.mxu0 0
        %845 = vmatpush.bf16.msra.mxu0 %v796
        %846 = vmatpush.bf16.msra.mxu0 %v794
        %847 = vmatmul.bf16.gmra.mxu0 %v834
        %v848 = vpop.f32.mrf.mxu0
        %v849 = vadd.f32 %v805, %v848
        %v850 = vpop.f32.mrf.mxu0
        %v851 = vadd.f32 %v810, %v850
        %852 = vmatmul.bf16.gmra.mxu0 %v837
        %v853 = vpop.f32.mrf.mxu0
        %v854 = vadd.f32 %v815, %v853
        %v855 = vpop.f32.mrf.mxu0
        %v856 = vadd.f32 %v820, %v855
        %857 = vdwg.mxu0
        %858 = vmatpush.bf16.msra.mxu0 0
        %859 = vmatpush.bf16.msra.mxu0 0
        %860 = vmatpush.bf16.msra.mxu0 0
        %861 = vmatpush.bf16.msra.mxu0 0
        %862 = vmatpush.bf16.msra.mxu0 0
        %863 = vmatpush.bf16.msra.mxu0 0
        %864 = vmatpush.bf16.msra.mxu0 %v797
        %865 = vmatpush.bf16.msra.mxu0 %v795
        %866 = vmatmul.bf16.gmra.mxu0 %v834
        %v867 = vpop.f32.mrf.mxu0
        %v868 = vadd.f32 %v805, %v867
        %v869 = vpop.f32.mrf.mxu0
        %v870 = vadd.f32 %v810, %v869
        %871 = vmatmul.bf16.gmra.mxu0 %v837
        %v872 = vpop.f32.mrf.mxu0
        %v873 = vadd.f32 %v815, %v872
        %v874 = vpop.f32.mrf.mxu0
        %v875 = vadd.f32 %v820, %v874
        %876 = vdwg.mxu0
        %v877 = vmax.f32 %v849, 0.0
        %v878 = vmax.f32 %v868, 0.0
        %v879 = vmax.f32 %v851, 0.0
        %v880 = vmax.f32 %v870, 0.0
        %v881 = vmax.f32 %v854, 0.0
        %v882 = vmax.f32 %v873, 0.0
        %v883 = vmax.f32 %v856, 0.0
        %v884 = vmax.f32 %v875, 0.0
        %v885 = vld [vmem:[%s4] sm:$0xff]
        %v886 = vld [vmem:[%s4 + $0x8] sm:$0xff]
        %v887 = vld [vmem:[%s4 + $0x10] sm:$0xff]
        %v888 = vld [vmem:[%s4 + $0x18] sm:$0xff]
        %890 = vset.pattern.permute.xlu0 0
        %891 = vperm.xlu0 %890, %v885
        %v892 = vpop.permute.xlu0 %891
        %895 = vset.pattern.permute.xlu0 0
        %896 = vperm.xlu0 %895, %v886
        %v897 = vpop.permute.xlu0 %896
        %900 = vset.pattern.permute.xlu0 0
        %901 = vperm.xlu0 %900, %v887
        %v902 = vpop.permute.xlu0 %901
        %905 = vset.pattern.permute.xlu0 0
        %906 = vperm.xlu0 %905, %v888
        %v907 = vpop.permute.xlu0 %906
        %v909 = vmul.f32 %v877, %v892
        %v910 = vmul.f32 %v878, %v892
        %v911 = vmul.f32 %v879, %v897
        %v912 = vmul.f32 %v880, %v897
        %v913 = vmul.f32 %v881, %v902
        %v914 = vmul.f32 %v882, %v902
        %v915 = vmul.f32 %v883, %v907
        %v916 = vmul.f32 %v884, %v907
        %v917 = vadd.f32 %v909, %v911
        %v918 = vadd.f32 %v917, %v913
        %v919 = vadd.f32 %v918, %v915
        %v920 = vrot.slane %v919, 4
        %v921 = vadd.f32 %v919, %v920
        %v922 = vrot.slane %v921, 2
        %v923 = vadd.f32 %v921, %v922
        %v924 = vrot.slane %v923, 1
        %v925 = vadd.f32 %v923, %v924
        %v926 = vadd.f32 %v910, %v912
        %v927 = vadd.f32 %v926, %v914
        %v928 = vadd.f32 %v927, %v916
        %v929 = vrot.slane %v928, 4
        %v930 = vadd.f32 %v928, %v929
        %v931 = vrot.slane %v930, 2
        %v932 = vadd.f32 %v930, %v931
        %v933 = vrot.slane %v932, 1
        %v934 = vadd.f32 %v932, %v933
        %v935 = vld [vmem:[%s5 + $0x40] sm:$0x1]
        %937 = vset.pattern.permute.xlu0 0
        %938 = vperm.xlu0 %937, %v935
        %v939 = vpop.permute.xlu0 %938
        %v941 = vadd.f32 %v925, %v939
        %v942 = vadd.f32 %v934, %v939
        %943 = vst [vmem:[%s468] sm:$0x1] %v941
        %s944 = scalar_lea.vmem %s468, 1 [#allocation4]
        %945 = vst [vmem:[%s944] sm:$0x1] %v942
        %s946 = sand.u32 %s190, 1
        %s947 = scalar_lea.sflag [#allocation5], %s946
        %s948 = sand.u32 %s190, 1
        %s949 = smul.addr %s948, 2
        %s950 = scalar_lea.vmem [#allocation4], %s949
        // Predicated region
        $region135: #{tpu_custom_call.1} parent=125 // pred_check
          %p951 = pneg %p200
        $region136: #{tpu_custom_call.1} parent=125 // pred_check_branch
          %953 = sbr.rel (%p951) target = $region138
        $region137: #{tpu_custom_call.1} parent=125 // pred_region
          %s954 = smul.u32 2, %s24
          %956 = vsyncadd %s947, 0
          %s957 = sadd.s32 %s25, %s954
          %s958 = scalar_lea.hbm %s6, %s957
          %s959 = sshll.u32 %s950, 4
          %s960 = int_to_ptr.vmem [resolvable:$true] %s959
          %s961 = sshll.u32 %s958, 4
          %s962 = int_to_ptr.hbm [resolvable:$true] %s961
          %967 = dma.vmem_to_hbm [thread:$0]  %s960, 32, %s962, %s947, 16, 16, 1
        $region138: #{tpu_custom_call.1} parent=125 // pred_fallthru
          _
      $region126: #{tpu_custom_call.1} parent=5 // pred_fallthru
        _
      %p968 = scmp.le.s32.totalorder 2, %s15
      // Predicated region
      $region139: #{tpu_custom_call.1} parent=5 // pred_check
        %p969 = pneg %p968
      $region140: #{tpu_custom_call.1} parent=5 // pred_check_branch
        %971 = sbr.rel (%p969) target = $region142
      $region141: #{tpu_custom_call.1} parent=5 // pred_region
        %s972 = ssub.s32 %s15, 2
        // Predicated region
        $region143: #{tpu_custom_call.1} parent=141 // pred_check
          %p973 = pneg %p206
        $region144: #{tpu_custom_call.1} parent=141 // pred_check_branch
          %975 = sbr.rel (%p973) target = $region146
        $region145: #{tpu_custom_call.1} parent=141 // pred_region
          %s976 = sand.u32 %s191, 1
          %s977 = scalar_lea.sflag [#allocation5], %s976
          %s978 = sand.u32 %s191, 1
          %s979 = smul.addr %s978, 2
          %s980 = scalar_lea.vmem [#allocation4], %s979
          %982 = dma.done %s977, 32
        $region146: #{tpu_custom_call.1} parent=141 // pred_fallthru
          _
      $region142: #{tpu_custom_call.1} parent=5 // pred_fallthru
        _
    $region6: #{tpu_custom_call.1} parent=1 // loop_footer
      %s19 = sadd.s32 1, %s15
    $region7: #{tpu_custom_call.1} parent=1 // loop_footer_branch
      %14 = sbr.rel target = $region3
    $region8: #{tpu_custom_call.1} parent=1 // loop_exit
      _
    %983 = vsyncpa [#allocation5], 1
    %s984 = scalar_lea.sflag [#allocation5], 1
    %985 = vsyncpa %s984, 1

</llo_original>
